<compile_context>
chip_gen: v7x
topology: tpu7x:2x2x1
jax: 0.10.0
libtpu: 0.0.40
codegen_flags: <defaults>
</compile_context>

<pallas_src>
import functools

import jax
import jax.numpy as jnp
from jax.experimental import pallas as pl
from jax.experimental.pallas import tpu as pltpu


def _round_up(v, m):
    return ((v + m - 1) // m) * m


def _ff_kernel_resident(x_ref, w1_ref, b1_ref, w2_ref, b2_ref, o_ref):
    # Grid: (row_tiles,).  Both weight matrices are resident in VMEM.
    #   x_ref  : (tm, d_in_p)       current row-tile (compute dtype, e.g. bf16)
    #   w1_ref : (d_in_p, d_inner_p)
    #   b1_ref : (1, d_inner_p)     f32
    #   w2_ref : (d_inner_p, d_in_p)
    #   b2_ref : (1, d_in_p)        f32
    #   o_ref  : (tm, d_in_p)
    h = jnp.dot(x_ref[...], w1_ref[...], preferred_element_type=jnp.float32)
    h = jnp.maximum(h + b1_ref[...], 0.0)            # bias + ReLU in f32
    # TODO(synk): training-mode Dropout (p > 0) not implemented; eval-mode identity used.
    # Note: h is downcast to the weight dtype (bf16) for the second MXU matmul;
    # this deviates slightly from PyTorch's f32 intermediate (documented).
    o = jnp.dot(h.astype(w2_ref.dtype), w2_ref[...],
                preferred_element_type=jnp.float32)
    o_ref[...] = (o + b2_ref[...]).astype(o_ref.dtype)


def _ff_kernel_tiled(x_ref, w1_ref, b1_ref, w2_ref, b2_ref, o_ref, acc_ref):
    # Grid: (row_tiles, d_inner_tiles).  d_inner axis is the accumulation axis.
    #   x_ref  : (tm, d_in_p)         current row-tile
    #   w1_ref : (d_in_p, t_inner)    W1 column-tile
    #   b1_ref : (1, t_inner)         bias-1 tile (f32)
    #   w2_ref : (t_inner, d_in_p)    W2 row-tile
    #   b2_ref : (1, d_in_p)          bias-2 (f32, full)
    #   o_ref  : (tm, d_in_p)         output row-tile (resident across j)
    #   acc_ref: (tm, d_in_p) f32     accumulator scratch
    j = pl.program_id(1)

    @pl.when(j == 0)
    def _init():
        acc_ref[...] = jnp.zeros_like(acc_ref)

    h = jnp.dot(x_ref[...], w1_ref[...], preferred_element_type=jnp.float32)
    h = jnp.maximum(h + b1_ref[...], 0.0)            # bias + ReLU in f32
    acc_ref[...] += jnp.dot(h.astype(w2_ref.dtype), w2_ref[...],
                            preferred_element_type=jnp.float32)

    @pl.when(j == pl.num_programs(1) - 1)
    def _finalize():
        o_ref[...] = (acc_ref[...] + b2_ref[...]).astype(o_ref.dtype)


@functools.partial(jax.jit, static_argnames=("tm", "t_inner", "compute_dtype"))
def positionwise_ff(x, w1, b1, w2, b2, *, tm=256, t_inner=None,
                    compute_dtype=jnp.bfloat16):
    """x: (seq, batch, d_input) -> (seq, batch, d_input).

    tm      : max row tile (multiple of 8; 256-512 recommended).
    t_inner : tile over d_inner (multiple of 128) for bounded VMEM; default =
              full d_inner (weights fully resident, single-step fused kernel).
    """
    seq, batch, d_input = x.shape
    d_inner = w1.shape[1]
    n = seq * batch

    # Pad feature dims up to lane-dense multiples of 128 (zero padding is exact
    # for Linear -> ReLU -> Linear; padded output columns are sliced off).
    d_in_p = _round_up(max(d_input, 128), 128)
    d_inner_p = _round_up(max(d_inner, 128), 128)

    if t_inner is None:
        t_inner = d_inner_p
    assert t_inner % 128 == 0, "t_inner must be a multiple of 128"
    assert d_inner_p % t_inner == 0, "padded d_inner must be divisible by t_inner"
    assert tm % 8 == 0, "tm must be a multiple of 8 (sublane tiling)"

    # Clamp the row tile to the (8-aligned) row count, then pad rows to a
    # multiple of the tile so arbitrary seq*batch works.
    tm = min(tm, _round_up(n, 8))
    rows = _round_up(n, tm)

    x2d = x.reshape(n, d_input)
    if rows != n or d_in_p != d_input:
        x2d = jnp.pad(x2d, ((0, rows - n), (0, d_in_p - d_input)))

    # bf16 operands for the MXU; biases stay f32 for a precise epilogue.
    xc = x2d.astype(compute_dtype)
    w1c = jnp.pad(w1, ((0, d_in_p - d_input), (0, d_inner_p - d_inner))
                  ).astype(compute_dtype)
    w2c = jnp.pad(w2, ((0, d_inner_p - d_inner), (0, d_in_p - d_input))
                  ).astype(compute_dtype)
    b1f = jnp.pad(b1, (0, d_inner_p - d_inner)).reshape(1, d_inner_p
                  ).astype(jnp.float32)
    b2f = jnp.pad(b2, (0, d_in_p - d_input)).reshape(1, d_in_p
                  ).astype(jnp.float32)

    cdt = jnp.dtype(compute_dtype).itemsize
    odt = jnp.dtype(x.dtype).itemsize

    single_step = (t_inner == d_inner_p)

    # Explicit scoped-VMEM budget: double-buffered in/out row tiles, weight and
    # bias blocks (constant-index blocks still get 2 buffers), the hidden
    # intermediate (f32 + bf16 copy), the f32 output / accumulator, plus
    # headroom.  Capped at 64 MiB so it is valid on every chip.
    vmem_est = (
        2 * tm * d_in_p * cdt             # x tile (double-buffered)
        + 2 * tm * d_in_p * odt           # out tile (double-buffered)
        + 2 * d_in_p * t_inner * cdt      # W1 block x2
        + 2 * t_inner * d_in_p * cdt      # W2 block x2
        + 2 * (t_inner + d_in_p) * 4      # biases x2
        + tm * t_inner * (4 + cdt)        # hidden intermediate (f32 + bf16)
        + tm * d_in_p * 4                 # f32 output / accumulator
    )
    vmem_limit = int(min(max(vmem_est * 3 // 2 + (2 << 20), 32 << 20), 64 << 20))

    flops = 2 * rows * d_in_p * d_inner_p * 2          # two matmuls
    bytes_accessed = int(
        rows * d_in_p * (cdt + odt)                    # activations in/out
        + 2 * d_in_p * d_inner_p * cdt                 # weights
        + (d_inner_p + d_in_p) * 4                     # biases
    )
    cost = pl.CostEstimate(flops=flops, transcendentals=0,
                           bytes_accessed=bytes_accessed)

    if single_step:
        grid_spec = pltpu.PrefetchScalarGridSpec(
            num_scalar_prefetch=0,
            grid=(rows // tm,),
            in_specs=[
                pl.BlockSpec((tm, d_in_p), lambda i: (i, 0)),        # x row-tile
                pl.BlockSpec((d_in_p, d_inner_p), lambda i: (0, 0)),  # W1 (resident)
                pl.BlockSpec((1, d_inner_p), lambda i: (0, 0)),       # b1
                pl.BlockSpec((d_inner_p, d_in_p), lambda i: (0, 0)),  # W2 (resident)
                pl.BlockSpec((1, d_in_p), lambda i: (0, 0)),          # b2
            ],
            out_specs=pl.BlockSpec((tm, d_in_p), lambda i: (i, 0)),
        )
        kernel = _ff_kernel_resident
        dim_sem = ("parallel",)
    else:
        grid_spec = pltpu.PrefetchScalarGridSpec(
            num_scalar_prefetch=0,
            grid=(rows // tm, d_inner_p // t_inner),
            in_specs=[
                pl.BlockSpec((tm, d_in_p), lambda i, j: (i, 0)),       # x row-tile
                pl.BlockSpec((d_in_p, t_inner), lambda i, j: (0, j)),  # W1 col-tile
                pl.BlockSpec((1, t_inner), lambda i, j: (0, j)),       # b1 tile
                pl.BlockSpec((t_inner, d_in_p), lambda i, j: (j, 0)),  # W2 row-tile
                pl.BlockSpec((1, d_in_p), lambda i, j: (0, 0)),        # b2 (full)
            ],
            out_specs=pl.BlockSpec((tm, d_in_p), lambda i, j: (i, 0)),
            scratch_shapes=[pltpu.VMEM((tm, d_in_p), jnp.float32)],
        )
        kernel = _ff_kernel_tiled
        dim_sem = ("parallel", "arbitrary")

    out2d = pl.pallas_call(
        kernel,
        out_shape=jax.ShapeDtypeStruct((rows, d_in_p), x.dtype),
        grid_spec=grid_spec,
        compiler_params=pltpu.CompilerParams(
            dimension_semantics=dim_sem,
            vmem_limit_bytes=vmem_limit,
        ),
        cost_estimate=cost,
    )(xc, w1c, b1f, w2c, b2f)

    return out2d[:n, :d_input].reshape(seq, batch, d_input)


def _init_params(key, d_input, d_inner, dtype=jnp.float32):
    """Deterministic synthetic params matching PyTorch Linear shapes
    (stored transposed: (in, out); biases 1-D like torch)."""
    k1, k2, k3, k4 = jax.random.split(key, 4)
    bound1 = 1.0 / jnp.sqrt(d_input)
    bound2 = 1.0 / jnp.sqrt(d_inner)
    w1 = jax.random.uniform(k1, (d_input, d_inner), dtype, -bound1, bound1)
    b1 = jax.random.uniform(k2, (d_inner,), dtype, -bound1, bound1)
    w2 = jax.random.uniform(k3, (d_inner, d_input), dtype, -bound2, bound2)
    b2 = jax.random.uniform(k4, (d_input,), dtype, -bound2, bound2)
    return w1, b1, w2, b2


if __name__ == "__main__":
    # Small but lane-dense demo shapes (d_input, d_inner multiples of 128).
    d_input, d_inner = 128, 256
    seq, batch = 12, 3            # 36 rows -> one (8-aligned) row tile
    dropout = 0.1                 # eval mode => identity

    key = jax.random.PRNGKey(0)
    kx, kp = jax.random.split(key)
    x = jax.random.normal(kx, (seq, batch, d_input), jnp.float32)
    w1, b1, w2, b2 = _init_params(kp, d_input, d_inner)

    # Pure-JAX reference using the same bf16-matmul / f32-accumulate math.
    def ref_ff(x, w1, b1, w2, b2):
        xb = x.reshape(-1, d_input).astype(jnp.bfloat16)
        h = jnp.dot(xb, w1.astype(jnp.bfloat16),
                    preferred_element_type=jnp.float32) + b1.reshape(1, -1)
        h = jnp.maximum(h, 0.0)
        o = jnp.dot(h.astype(jnp.bfloat16), w2.astype(jnp.bfloat16),
                    preferred_element_type=jnp.float32) + b2.reshape(1, -1)
        return o.astype(x.dtype).reshape(seq, batch, d_input)

    ref = ref_ff(x, w1, b1, w2, b2)

    # 1) Default path: weights fully resident, single fused step (no scratch).
    out = jax.block_until_ready(positionwise_ff(x, w1, b1, w2, b2))
    assert out.shape == x.shape
    assert jnp.allclose(out, ref, atol=1e-2, rtol=1e-2), "mismatch (resident weights)"

    # 2) d_inner-tiled path (bounded-VMEM / v7x style): exercises the accumulator.
    out_t = jax.block_until_ready(
        positionwise_ff(x, w1, b1, w2, b2, tm=64, t_inner=128))
    assert jnp.allclose(out_t, ref, atol=1e-2, rtol=1e-2), "mismatch (tiled d_inner)"

    print("KERNEL_OK")
</pallas_src>

<mosaic_0001>
module attributes {stable_mosaic.version = 11 : i64} {
  func.func @_ff_kernel_resident(%arg0: i32, %arg1: memref<40x128xbf16, #tpu.memory_space<vmem>>, %arg2: memref<128x256xbf16, #tpu.memory_space<vmem>>, %arg3: memref<1x256xf32, #tpu.memory_space<vmem>>, %arg4: memref<256x128xbf16, #tpu.memory_space<vmem>>, %arg5: memref<1x128xf32, #tpu.memory_space<vmem>>, %arg6: memref<40x128xf32, #tpu.memory_space<vmem>>) attributes {dimension_semantics = [#tpu.dimension_semantics<parallel>], iteration_bounds = array<i64: 1>, scalar_prefetch = 0 : i64, scratch_operands = 0 : i64, tpu.core_type = #tpu.core_type<tc>, window_params = [{transform_indices = @transform_0, window_bounds = array<i64: 40, 128>}, {pipeline_mode = #tpu.pipeline_mode<synchronous>, transform_indices = @transform_1, window_bounds = array<i64: 128, 256>}, {pipeline_mode = #tpu.pipeline_mode<synchronous>, transform_indices = @transform_2, window_bounds = array<i64: 1, 256>}, {pipeline_mode = #tpu.pipeline_mode<synchronous>, transform_indices = @transform_3, window_bounds = array<i64: 256, 128>}, {pipeline_mode = #tpu.pipeline_mode<synchronous>, transform_indices = @transform_4, window_bounds = array<i64: 1, 128>}, {transform_indices = @transform_5, window_bounds = array<i64: 40, 128>}]} {
    %c0 = arith.constant 0 : index
    %c0_0 = arith.constant 0 : index
    %0 = vector.load %arg1[%c0, %c0_0] : memref<40x128xbf16, #tpu.memory_space<vmem>>, vector<40x128xbf16>
    %c0_1 = arith.constant 0 : index
    %c0_2 = arith.constant 0 : index
    %1 = vector.load %arg2[%c0_1, %c0_2] : memref<128x256xbf16, #tpu.memory_space<vmem>>, vector<128x256xbf16>
    %cst = arith.constant dense<0.000000e+00> : vector<40x256xf32>
    %2 = tpu.matmul %0, %1, %cst {dimension_numbers = #tpu.dot_dimension_numbers<[1], [0], [0], [1], [0, 0, 1, 1], [], []>} : vector<40x128xbf16>, vector<128x256xbf16>, vector<40x256xf32> -> vector<40x256xf32>
    %c0_3 = arith.constant 0 : index
    %c0_4 = arith.constant 0 : index
    %3 = vector.load %arg3[%c0_3, %c0_4] : memref<1x256xf32, #tpu.memory_space<vmem>>, vector<1x256xf32>
    %4 = vector.broadcast %3 : vector<1x256xf32> to vector<40x256xf32>
    %5 = arith.addf %2, %4 : vector<40x256xf32>
    %cst_5 = arith.constant 0.000000e+00 : f32
    %6 = vector.broadcast %cst_5 : f32 to vector<40x256xf32>
    %7 = arith.maximumf %5, %6 : vector<40x256xf32>
    %8 = arith.truncf %7 : vector<40x256xf32> to vector<40x256xbf16>
    %c0_6 = arith.constant 0 : index
    %c0_7 = arith.constant 0 : index
    %9 = vector.load %arg4[%c0_6, %c0_7] : memref<256x128xbf16, #tpu.memory_space<vmem>>, vector<256x128xbf16>
    %cst_8 = arith.constant dense<0.000000e+00> : vector<40x128xf32>
    %10 = tpu.matmul %8, %9, %cst_8 {dimension_numbers = #tpu.dot_dimension_numbers<[1], [0], [0], [1], [0, 0, 1, 1], [], []>} : vector<40x256xbf16>, vector<256x128xbf16>, vector<40x128xf32> -> vector<40x128xf32>
    %c0_9 = arith.constant 0 : index
    %c0_10 = arith.constant 0 : index
    %11 = vector.load %arg5[%c0_9, %c0_10] : memref<1x128xf32, #tpu.memory_space<vmem>>, vector<1x128xf32>
    %12 = vector.broadcast %11 : vector<1x128xf32> to vector<40x128xf32>
    %13 = arith.addf %10, %12 : vector<40x128xf32>
    %c0_11 = arith.constant 0 : index
    %c0_12 = arith.constant 0 : index
    %14 = vector.load %arg6[%c0_11, %c0_12] : memref<40x128xf32, #tpu.memory_space<vmem>>, vector<40x128xf32>
    tpu.vector_store %arg6[%c0_11, %c0_12], %13 {strides = array<i32>} : memref<40x128xf32, #tpu.memory_space<vmem>>, vector<40x128xf32>,
    return
  }
  func.func @transform_0(%arg0: i32) -> (i32, i32) {
    %c0_i32 = arith.constant 0 : i32
    %c0_i32_0 = arith.constant 0 : i32
    return %arg0, %c0_i32 : i32, i32
  }
  func.func @transform_1(%arg0: i32) -> (i32, i32) {
    %c0_i32 = arith.constant 0 : i32
    %c0_i32_0 = arith.constant 0 : i32
    %c0_i32_1 = arith.constant 0 : i32
    return %c0_i32, %c0_i32_0 : i32, i32
  }
  func.func @transform_2(%arg0: i32) -> (i32, i32) {
    %c0_i32 = arith.constant 0 : i32
    %c0_i32_0 = arith.constant 0 : i32
    %c0_i32_1 = arith.constant 0 : i32
    return %c0_i32, %c0_i32_0 : i32, i32
  }
  func.func @transform_3(%arg0: i32) -> (i32, i32) {
    %c0_i32 = arith.constant 0 : i32
    %c0_i32_0 = arith.constant 0 : i32
    %c0_i32_1 = arith.constant 0 : i32
    return %c0_i32, %c0_i32_0 : i32, i32
  }
  func.func @transform_4(%arg0: i32) -> (i32, i32) {
    %c0_i32 = arith.constant 0 : i32
    %c0_i32_0 = arith.constant 0 : i32
    %c0_i32_1 = arith.constant 0 : i32
    return %c0_i32, %c0_i32_0 : i32, i32
  }
  func.func @transform_5(%arg0: i32) -> (i32, i32) {
    %c0_i32 = arith.constant 0 : i32
    %c0_i32_0 = arith.constant 0 : i32
    return %arg0, %c0_i32 : i32, i32
  }
}

</mosaic_0001>

<llo_original>
// kernel: positionwise_ff.1
$region0: #{positionwise_ff.1}
  #allocation0 [shape = 'u32[]', space=smem, size = 0x4, offset = 0x4, fixed_abs, tag = 'smem constant byte address 0x4 - core index']
  #allocation1 [shape = 'u32[144,128]{1,0:T(1,128)}', space=vmem, size = 0x12000, scoped, tag = 'internal scratch']
  %s0 = inlined_call_operand.vmem [shape: bf16[40,128], index: 0, kind: input, shape index: {}]
  %s1 = inlined_call_operand.vmem [shape: bf16[128,256], index: 1, kind: input, shape index: {}]
  %s2 = inlined_call_operand.vmem [shape: f32[1,256], index: 2, kind: input, shape index: {}]
  %s3 = inlined_call_operand.vmem [shape: bf16[256,128], index: 3, kind: input, shape index: {}]
  %s4 = inlined_call_operand.vmem [shape: f32[1,128], index: 4, kind: input, shape index: {}]
  %s5 = inlined_call_operand.vmem [shape: f32[40,128], index: 5, kind: output, shape index: {}]
  %s6 = sld [smem:[#allocation0]]
  $region30: #{positionwise_ff.1} parent=0
    _
  %s8 = ssub.s32 1, %s6
  %s9 = scalar_select 0, %s8, %s6
  // Predicated region
  $region2: #{positionwise_ff.1} parent=0 // pred_check
    _
  $region3: #{positionwise_ff.1} parent=0 // pred_check_branch
    %11 = sbr.rel (0) target = $region5
  $region4: #{positionwise_ff.1} parent=0 // pred_region
    _
  $region5: #{positionwise_ff.1} parent=0 // pred_fallthru
    _
  // Predicated region
  $region6: #{positionwise_ff.1} parent=0 // pred_check
    _
  $region7: #{positionwise_ff.1} parent=0 // pred_check_branch
    %13 = sbr.rel (0) target = $region9
  $region8: #{positionwise_ff.1} parent=0 // pred_region
    _
  $region9: #{positionwise_ff.1} parent=0 // pred_fallthru
    _
  // Predicated region
  $region10: #{positionwise_ff.1} parent=0 // pred_check
    _
  $region11: #{positionwise_ff.1} parent=0 // pred_check_branch
    %15 = sbr.rel (0) target = $region13
  $region12: #{positionwise_ff.1} parent=0 // pred_region
    _
  $region13: #{positionwise_ff.1} parent=0 // pred_fallthru
    _
  // Predicated region
  $region14: #{positionwise_ff.1} parent=0 // pred_check
    _
  $region15: #{positionwise_ff.1} parent=0 // pred_check_branch
    %17 = sbr.rel (0) target = $region17
  $region16: #{positionwise_ff.1} parent=0 // pred_region
    _
  $region17: #{positionwise_ff.1} parent=0 // pred_fallthru
    _
  // Predicated region
  $region18: #{positionwise_ff.1} parent=0 // pred_check
    _
  $region19: #{positionwise_ff.1} parent=0 // pred_check_branch
    %19 = sbr.rel (0) target = $region21
  $region20: #{positionwise_ff.1} parent=0 // pred_region
    _
  $region21: #{positionwise_ff.1} parent=0 // pred_fallthru
    _
  %v21 = vld [vmem:[%s0] sm:$0xf]
  %v22 = vld [vmem:[%s0 + $0x4] sm:$0xf]
  %v23 = vld [vmem:[%s0 + $0x8] sm:$0xf]
  %v24 = vld [vmem:[%s0 + $0xc] sm:$0xf]
  %v25 = vld [vmem:[%s0 + $0x10] sm:$0xf]
  %v26 = vld [vmem:[%s1] sm:$0xff]
  %v27 = vld [vmem:[%s1 + $0x8] sm:$0xff]
  %v28 = vld [vmem:[%s1 + $0x10] sm:$0xff]
  %v29 = vld [vmem:[%s1 + $0x18] sm:$0xff]
  %v30 = vld [vmem:[%s1 + $0x20] sm:$0xff]
  %v31 = vld [vmem:[%s1 + $0x28] sm:$0xff]
  %v32 = vld [vmem:[%s1 + $0x30] sm:$0xff]
  %v33 = vld [vmem:[%s1 + $0x38] sm:$0xff]
  %v34 = vld [vmem:[%s1 + $0x40] sm:$0xff]
  %v35 = vld [vmem:[%s1 + $0x48] sm:$0xff]
  %v36 = vld [vmem:[%s1 + $0x50] sm:$0xff]
  %v37 = vld [vmem:[%s1 + $0x58] sm:$0xff]
  %v38 = vld [vmem:[%s1 + $0x60] sm:$0xff]
  %v39 = vld [vmem:[%s1 + $0x68] sm:$0xff]
  %v40 = vld [vmem:[%s1 + $0x70] sm:$0xff]
  %v41 = vld [vmem:[%s1 + $0x78] sm:$0xff]
  %v42 = vld [vmem:[%s2] sm:$0x3]
  %v44 = vlaneseq
  %v45 = vshrl.u32 %v44, 7
  %v46 = vsub.s32 0, %v45
  %v47 = vrot.slane %v42, %v46
  %v48 = vlaneseq
  %v49 = vshrl.u32 %v48, 7
  %v50 = vsub.s32 1, %v49
  %v51 = vrot.slane %v42, %v50
  %v59 = vunpack.c.l.b16 %v21
  %v60 = vunpack.c.l.b16 %v22
  %v61 = vunpack.c.l.b16 %v23
  %v62 = vunpack.c.l.b16 %v24
  %v63 = vunpack.c.l.b16 %v25
  %v64 = vpack.c.b16 %v60, %v59
  %v65 = vpack.c.b16 %v62, %v61
  %v66 = vpack.c.b16 %v63, %v63
  %v86 = vunpack.c.l.b16 %v26
  %v87 = vunpack.c.h.b16 %v26
  %v88 = vunpack.c.l.b16 %v27
  %v89 = vunpack.c.h.b16 %v27
  %v90 = vunpack.c.l.b16 %v28
  %v91 = vunpack.c.h.b16 %v28
  %v92 = vunpack.c.l.b16 %v29
  %v93 = vunpack.c.h.b16 %v29
  %v94 = vunpack.c.l.b16 %v30
  %v95 = vunpack.c.h.b16 %v30
  %v96 = vunpack.c.l.b16 %v31
  %v97 = vunpack.c.h.b16 %v31
  %v98 = vunpack.c.l.b16 %v32
  %v99 = vunpack.c.h.b16 %v32
  %v100 = vunpack.c.l.b16 %v33
  %v101 = vunpack.c.h.b16 %v33
  %v102 = vunpack.c.l.b16 %v34
  %v103 = vunpack.c.h.b16 %v34
  %v104 = vunpack.c.l.b16 %v35
  %v105 = vunpack.c.h.b16 %v35
  %v106 = vunpack.c.l.b16 %v36
  %v107 = vunpack.c.h.b16 %v36
  %v108 = vunpack.c.l.b16 %v37
  %v109 = vunpack.c.h.b16 %v37
  %v110 = vunpack.c.l.b16 %v38
  %v111 = vunpack.c.h.b16 %v38
  %v112 = vunpack.c.l.b16 %v39
  %v113 = vunpack.c.h.b16 %v39
  %v114 = vunpack.c.l.b16 %v40
  %v115 = vunpack.c.h.b16 %v40
  %v116 = vunpack.c.l.b16 %v41
  %v117 = vunpack.c.h.b16 %v41
  %v118 = vpack.c.b16 %v88, %v86
  %v119 = vpack.c.b16 %v89, %v87
  %v120 = vpack.c.b16 %v92, %v90
  %v121 = vpack.c.b16 %v93, %v91
  %v122 = vpack.c.b16 %v96, %v94
  %v123 = vpack.c.b16 %v97, %v95
  %v124 = vpack.c.b16 %v100, %v98
  %v125 = vpack.c.b16 %v101, %v99
  %v126 = vpack.c.b16 %v104, %v102
  %v127 = vpack.c.b16 %v105, %v103
  %v128 = vpack.c.b16 %v108, %v106
  %v129 = vpack.c.b16 %v109, %v107
  %v130 = vpack.c.b16 %v112, %v110
  %v131 = vpack.c.b16 %v113, %v111
  %v132 = vpack.c.b16 %v116, %v114
  %v133 = vpack.c.b16 %v117, %v115
  %150 = vmatprep.subr.bf16.mxu0 %v119
  %151 = vmatpush1.bf16.msra.mxu0 %v118
  %152 = vmatprep.subr.bf16.mxu0 %v121
  %153 = vmatpush1.bf16.msra.mxu0 %v120
  %154 = vmatprep.subr.bf16.mxu0 %v123
  %155 = vmatpush1.bf16.msra.mxu0 %v122
  %156 = vmatprep.subr.bf16.mxu0 %v125
  %157 = vmatpush1.bf16.msra.mxu0 %v124
  %158 = vmatprep.subr.bf16.mxu0 %v127
  %159 = vmatpush1.bf16.msra.mxu0 %v126
  %160 = vmatprep.subr.bf16.mxu0 %v129
  %161 = vmatpush1.bf16.msra.mxu0 %v128
  %162 = vmatprep.subr.bf16.mxu0 %v131
  %163 = vmatpush1.bf16.msra.mxu0 %v130
  %164 = vmatprep.subr.bf16.mxu0 %v133
  %165 = vmatpush1.bf16.msra.mxu0 %v132
  %166 = vmatprep.subr.bf16.mxu0 0
  %167 = vmatpush1.bf16.msra.mxu0 0
  %168 = vmatprep.subr.bf16.mxu0 0
  %169 = vmatpush1.bf16.msra.mxu0 0
  %170 = vmatprep.subr.bf16.mxu0 0
  %171 = vmatpush1.bf16.msra.mxu0 0
  %172 = vmatprep.subr.bf16.mxu0 0
  %173 = vmatpush1.bf16.msra.mxu0 0
  %174 = vmatprep.subr.bf16.mxu0 0
  %175 = vmatpush1.bf16.msra.mxu0 0
  %176 = vmatprep.subr.bf16.mxu0 0
  %177 = vmatpush1.bf16.msra.mxu0 0
  %178 = vmatprep.subr.bf16.mxu0 0
  %179 = vmatpush1.bf16.msra.mxu0 0
  %180 = vmatprep.subr.bf16.mxu0 0
  %181 = vmatpush1.bf16.msra.mxu0 0
  %182 = vmatprep.mubr.bf16.mxu0 0
  %183 = vmatmul.mubr.bf16.gmra.mrb[0].mxu0 %v64
  %v184 = vpop.f32.mrb[0].mxu0
  %v185 = vadd.f32 %v47, %v184
  %v186 = vpop.f32.mrb[0].mxu0
  %v187 = vadd.f32 %v51, %v186
  %v188 = vpop.f32.mrb[0].mxu0
  %v189 = vadd.f32 %v47, %v188
  %v190 = vpop.f32.mrb[0].mxu0
  %v191 = vadd.f32 %v51, %v190
  %192 = vmatprep.mubr.bf16.mxu0 0
  %193 = vmatmul.mubr.bf16.gmra.mrb[0].mxu0 %v65
  %v194 = vpop.f32.mrb[0].mxu0
  %v195 = vadd.f32 %v47, %v194
  %v196 = vpop.f32.mrb[0].mxu0
  %v197 = vadd.f32 %v51, %v196
  %v198 = vpop.f32.mrb[0].mxu0
  %v199 = vadd.f32 %v47, %v198
  %v200 = vpop.f32.mrb[0].mxu0
  %v201 = vadd.f32 %v51, %v200
  %202 = vmatprep.mubr.bf16.mxu0 0
  %203 = vmatmul.mubr.bf16.gmra.mrb[0].mxu0 %v66
  %v204 = vpop.f32.mrb[0].mxu0
  %v205 = vadd.f32 %v47, %v204
  %v206 = vpop.f32.mrb[0].mxu0
  %v207 = vadd.f32 %v51, %v206
  %v208 = vpop.f32.mrb[0].mxu0
  %v209 = vpop.f32.mrb[0].mxu0
  %210 = vdwg.mxu0
  %v211 = vmax.f32 %v185, 0.0
  %v212 = vmax.f32 %v187, 0.0
  %v213 = vmax.f32 %v189, 0.0
  %v214 = vmax.f32 %v191, 0.0
  %v215 = vmax.f32 %v195, 0.0
  %v216 = vmax.f32 %v197, 0.0
  %v217 = vmax.f32 %v199, 0.0
  %v218 = vmax.f32 %v201, 0.0
  %v219 = vmax.f32 %v205, 0.0
  %v220 = vmax.f32 %v207, 0.0
  %v221 = vpack.c.bf16 %v213, %v211
  %v222 = vpack.c.bf16 %v214, %v212
  %v223 = vpack.c.bf16 %v217, %v215
  %v224 = vpack.c.bf16 %v218, %v216
  %v225 = vpack.c.bf16 %v219, %v219
  %v226 = vpack.c.bf16 %v220, %v220
  %v227 = vld [vmem:[%s3] sm:$0xf]
  %v228 = vld [vmem:[%s3 + $0x4] sm:$0xf]
  %v229 = vld [vmem:[%s3 + $0x8] sm:$0xf]
  %v230 = vld [vmem:[%s3 + $0xc] sm:$0xf]
  %v231 = vld [vmem:[%s3 + $0x10] sm:$0xf]
  %v232 = vld [vmem:[%s3 + $0x14] sm:$0xf]
  %v233 = vld [vmem:[%s3 + $0x18] sm:$0xf]
  %v234 = vld [vmem:[%s3 + $0x1c] sm:$0xf]
  %v235 = vld [vmem:[%s3 + $0x20] sm:$0xf]
  %v236 = vld [vmem:[%s3 + $0x24] sm:$0xf]
  %v237 = vld [vmem:[%s3 + $0x28] sm:$0xf]
  %v238 = vld [vmem:[%s3 + $0x2c] sm:$0xf]
  %v239 = vld [vmem:[%s3 + $0x30] sm:$0xf]
  %v240 = vld [vmem:[%s3 + $0x34] sm:$0xf]
  %v241 = vld [vmem:[%s3 + $0x38] sm:$0xf]
  %v242 = vld [vmem:[%s3 + $0x3c] sm:$0xf]
  %v243 = vld [vmem:[%s3 + $0x40] sm:$0xf]
  %v244 = vld [vmem:[%s3 + $0x44] sm:$0xf]
  %v245 = vld [vmem:[%s3 + $0x48] sm:$0xf]
  %v246 = vld [vmem:[%s3 + $0x4c] sm:$0xf]
  %v247 = vld [vmem:[%s3 + $0x50] sm:$0xf]
  %v248 = vld [vmem:[%s3 + $0x54] sm:$0xf]
  %v249 = vld [vmem:[%s3 + $0x58] sm:$0xf]
  %v250 = vld [vmem:[%s3 + $0x5c] sm:$0xf]
  %v251 = vld [vmem:[%s3 + $0x60] sm:$0xf]
  %v252 = vld [vmem:[%s3 + $0x64] sm:$0xf]
  %v253 = vld [vmem:[%s3 + $0x68] sm:$0xf]
  %v254 = vld [vmem:[%s3 + $0x6c] sm:$0xf]
  %v255 = vld [vmem:[%s3 + $0x70] sm:$0xf]
  %v256 = vld [vmem:[%s3 + $0x74] sm:$0xf]
  %v257 = vld [vmem:[%s3 + $0x78] sm:$0xf]
  %v258 = vld [vmem:[%s3 + $0x7c] sm:$0xf]
  %v259 = vld [vmem:[%s4] sm:$0x1]
  %v261 = vlaneseq
  %v262 = vshrl.u32 %v261, 7
  %v263 = vsub.s32 0, %v262
  %v264 = vrot.slane %v259, %v263
  %v298 = vunpack.c.l.b16 %v227
  %v299 = vunpack.c.l.b16 %v228
  %v300 = vunpack.c.l.b16 %v229
  %v301 = vunpack.c.l.b16 %v230
  %v302 = vunpack.c.l.b16 %v231
  %v303 = vunpack.c.l.b16 %v232
  %v304 = vunpack.c.l.b16 %v233
  %v305 = vunpack.c.l.b16 %v234
  %v306 = vunpack.c.l.b16 %v235
  %v307 = vunpack.c.l.b16 %v236
  %v308 = vunpack.c.l.b16 %v237
  %v309 = vunpack.c.l.b16 %v238
  %v310 = vunpack.c.l.b16 %v239
  %v311 = vunpack.c.l.b16 %v240
  %v312 = vunpack.c.l.b16 %v241
  %v313 = vunpack.c.l.b16 %v242
  %v314 = vunpack.c.l.b16 %v243
  %v315 = vunpack.c.l.b16 %v244
  %v316 = vunpack.c.l.b16 %v245
  %v317 = vunpack.c.l.b16 %v246
  %v318 = vunpack.c.l.b16 %v247
  %v319 = vunpack.c.l.b16 %v248
  %v320 = vunpack.c.l.b16 %v249
  %v321 = vunpack.c.l.b16 %v250
  %v322 = vunpack.c.l.b16 %v251
  %v323 = vunpack.c.l.b16 %v252
  %v324 = vunpack.c.l.b16 %v253
  %v325 = vunpack.c.l.b16 %v254
  %v326 = vunpack.c.l.b16 %v255
  %v327 = vunpack.c.l.b16 %v256
  %v328 = vunpack.c.l.b16 %v257
  %v329 = vunpack.c.l.b16 %v258
  %v330 = vpack.c.b16 %v299, %v298
  %v331 = vpack.c.b16 %v301, %v300
  %v332 = vpack.c.b16 %v303, %v302
  %v333 = vpack.c.b16 %v305, %v304
  %v334 = vpack.c.b16 %v307, %v306
  %v335 = vpack.c.b16 %v309, %v308
  %v336 = vpack.c.b16 %v311, %v310
  %v337 = vpack.c.b16 %v313, %v312
  %v338 = vpack.c.b16 %v315, %v314
  %v339 = vpack.c.b16 %v317, %v316
  %v340 = vpack.c.b16 %v319, %v318
  %v341 = vpack.c.b16 %v321, %v320
  %v342 = vpack.c.b16 %v323, %v322
  %v343 = vpack.c.b16 %v325, %v324
  %v344 = vpack.c.b16 %v327, %v326
  %v345 = vpack.c.b16 %v329, %v328
  %362 = vmatprep.subr.bf16.mxu0 0
  %363 = vmatpush1.bf16.msra.mxu0 %v330
  %364 = vmatprep.subr.bf16.mxu0 0
  %365 = vmatpush1.bf16.msra.mxu0 %v331
  %366 = vmatprep.subr.bf16.mxu0 0
  %367 = vmatpush1.bf16.msra.mxu0 %v332
  %368 = vmatprep.subr.bf16.mxu0 0
  %369 = vmatpush1.bf16.msra.mxu0 %v333
  %370 = vmatprep.subr.bf16.mxu0 0
  %371 = vmatpush1.bf16.msra.mxu0 %v334
  %372 = vmatprep.subr.bf16.mxu0 0
  %373 = vmatpush1.bf16.msra.mxu0 %v335
  %374 = vmatprep.subr.bf16.mxu0 0
  %375 = vmatpush1.bf16.msra.mxu0 %v336
  %376 = vmatprep.subr.bf16.mxu0 0
  %377 = vmatpush1.bf16.msra.mxu0 %v337
  %378 = vmatprep.subr.bf16.mxu0 0
  %379 = vmatpush1.bf16.msra.mxu0 %v338
  %380 = vmatprep.subr.bf16.mxu0 0
  %381 = vmatpush1.bf16.msra.mxu0 %v339
  %382 = vmatprep.subr.bf16.mxu0 0
  %383 = vmatpush1.bf16.msra.mxu0 %v340
  %384 = vmatprep.subr.bf16.mxu0 0
  %385 = vmatpush1.bf16.msra.mxu0 %v341
  %386 = vmatprep.subr.bf16.mxu0 0
  %387 = vmatpush1.bf16.msra.mxu0 %v342
  %388 = vmatprep.subr.bf16.mxu0 0
  %389 = vmatpush1.bf16.msra.mxu0 %v343
  %390 = vmatprep.subr.bf16.mxu0 0
  %391 = vmatpush1.bf16.msra.mxu0 %v344
  %392 = vmatprep.subr.bf16.mxu0 0
  %393 = vmatpush1.bf16.msra.mxu0 %v345
  %394 = vmatprep.mubr.bf16.mxu0 %v222
  %395 = vmatmul.mubr.bf16.gmra.mrb[0].mxu0 %v221
  %v396 = vpop.f32.mrb[0].mxu0
  %v397 = vadd.f32 %v264, %v396
  %v398 = vpop.f32.mrb[0].mxu0
  %v399 = vpop.f32.mrb[0].mxu0
  %v400 = vadd.f32 %v264, %v399
  %v401 = vpop.f32.mrb[0].mxu0
  %402 = vmatprep.mubr.bf16.mxu0 %v224
  %403 = vmatmul.mubr.bf16.gmra.mrb[0].mxu0 %v223
  %v404 = vpop.f32.mrb[0].mxu0
  %v405 = vadd.f32 %v264, %v404
  %v406 = vpop.f32.mrb[0].mxu0
  %v407 = vpop.f32.mrb[0].mxu0
  %v408 = vadd.f32 %v264, %v407
  %v409 = vpop.f32.mrb[0].mxu0
  %410 = vmatprep.mubr.bf16.mxu0 %v226
  %411 = vmatmul.mubr.bf16.gmra.mrb[0].mxu0 %v225
  %v412 = vpop.f32.mrb[0].mxu0
  %v413 = vadd.f32 %v264, %v412
  %v414 = vpop.f32.mrb[0].mxu0
  %v415 = vpop.f32.mrb[0].mxu0
  %v416 = vpop.f32.mrb[0].mxu0
  %417 = vdwg.mxu0
  %418 = vst [vmem:[%s5] sm:$0xff] %v397
  %419 = vst [vmem:[%s5 + $0x8] sm:$0xff] %v400
  %420 = vst [vmem:[%s5 + $0x10] sm:$0xff] %v405
  %421 = vst [vmem:[%s5 + $0x18] sm:$0xff] %v408
  %422 = vst [vmem:[%s5 + $0x20] sm:$0xff] %v413
  // Predicated region
  $region22: #{positionwise_ff.1} parent=0 // pred_check
    _
  $region23: #{positionwise_ff.1} parent=0 // pred_check_branch
    %424 = sbr.rel (0) target = $region25
  $region24: #{positionwise_ff.1} parent=0 // pred_region
    _
  $region25: #{positionwise_ff.1} parent=0 // pred_fallthru
    _
  // Predicated region
  $region26: #{positionwise_ff.1} parent=0 // pred_check
    _
  $region27: #{positionwise_ff.1} parent=0 // pred_check_branch
    %426 = sbr.rel (0) target = $region29
  $region28: #{positionwise_ff.1} parent=0 // pred_region
    _
  $region29: #{positionwise_ff.1} parent=0 // pred_fallthru
    _

</llo_original>
